<compile_context>
chip_gen: v5e
topology: v5e:2x2
jax: 0.10.0
libtpu: 0.0.40
codegen_flags: <defaults>
</compile_context>

<pallas_src>
import functools

import jax
import jax.numpy as jnp
from jax.experimental import pallas as pl
from jax.experimental.pallas import tpu as pltpu


def _round_up(v, m):
    return (v + m - 1) // m * m


def _linear_hash_kernel(x_ref, w_ref, b_ref, o_ref, *, n_out, compute_dtype):
    # x_ref: (tm, K) input dtype    w_ref: (K, N_pad) compute dtype
    # b_ref: (1, n_out) f32         o_ref: (tm, n_out) out dtype
    x = x_ref[...]
    if x.dtype != compute_dtype:
        x = x.astype(compute_dtype)          # VPU cast; free, kernel is HBM-bound
    acc = jnp.dot(x, w_ref[...], preferred_element_type=jnp.float32)  # (tm, N_pad)
    acc = acc[:, :n_out] + b_ref[...]        # epilogue only on real columns
    o_ref[...] = jnp.tanh(acc).astype(o_ref.dtype)


def prepare_linear_hash_params(weight, bias, *, compute_dtype=jnp.bfloat16):
    """One-time parameter prep (call at init, not per forward step).

    weight: (outputDim, inputDim) as in torch nn.Linear.  bias: (outputDim,).
    Returns (w_padded, bias2d): weight transposed to (K, N_pad) with the output
    dim lane-padded to a multiple of 128 and cast to the MXU compute dtype, and
    bias as (1, N) f32.
    """
    n_out, _ = weight.shape
    w_t = weight.T                                     # (K, N)
    n_pad = _round_up(n_out, 128)
    if n_pad != n_out:
        w_t = jnp.pad(w_t, ((0, 0), (0, n_pad - n_out)))
    w_padded = w_t.astype(compute_dtype)
    bias2d = bias.reshape(1, n_out).astype(jnp.float32)
    return w_padded, bias2d


def linear_hash_prepared(x, w_padded, bias2d, *, tile_m=1024,
                         compute_dtype=jnp.bfloat16):
    """y = tanh(x @ W.T + b) using pre-prepared (padded, cast) parameters."""
    M, K = x.shape
    Kw, N_pad = w_padded.shape
    assert K == Kw
    n_out = bias2d.shape[-1]
    out_dtype = x.dtype

    # Row tile: always a multiple of 8, no padding of x (ragged last block is
    # handled by the grid; OOB output rows are masked on write).
    tm = max(8, min(_round_up(tile_m, 8), _round_up(M, 8)))
    # Keep the double-buffered x tile comfortably inside VMEM (v7x: 64 MiB/TC):
    # shrink tm before reaching for a bigger vmem_limit.
    x_isz = jnp.dtype(x.dtype).itemsize
    while 2 * tm * K * x_isz > (24 << 20) and tm > 256:
        tm //= 2
    grid = (pl.cdiv(M, tm),)

    # VMEM budget: x tile (double buffered), weight + bias (grid-invariant but
    # still double buffered by the pipeline), out tile (double buffered), and
    # the f32 accumulator / epilogue temporary.
    w_isz = jnp.dtype(w_padded.dtype).itemsize
    o_isz = jnp.dtype(out_dtype).itemsize
    footprint = (2 * tm * K * x_isz
                 + 2 * K * N_pad * w_isz
                 + 2 * N_pad * 4
                 + 2 * tm * n_out * o_isz
                 + tm * N_pad * 4)
    vmem_limit = None
    if footprint > (12 << 20):
        vmem_limit = min(int(footprint * 3 // 2) + (2 << 20), 48 << 20)

    kernel = functools.partial(_linear_hash_kernel, n_out=n_out,
                               compute_dtype=compute_dtype)

    return pl.pallas_call(
        kernel,
        out_shape=jax.ShapeDtypeStruct((M, n_out), out_dtype),
        grid_spec=pltpu.PrefetchScalarGridSpec(
            num_scalar_prefetch=0,
            grid=grid,
            in_specs=[
                pl.BlockSpec((tm, K), lambda i: (i, 0)),      # x tile, pipelined
                pl.BlockSpec((K, N_pad), lambda i: (0, 0)),   # weight, resident
                pl.BlockSpec((1, n_out), lambda i: (0, 0)),   # bias, resident
            ],
            out_specs=pl.BlockSpec((tm, n_out), lambda i: (i, 0)),
        ),
        compiler_params=pltpu.CompilerParams(
            dimension_semantics=("parallel",),   # megacore / v7x: split rows
            vmem_limit_bytes=vmem_limit,
        ),
    )(x, w_padded, bias2d)


def linear_hash(x, weight, bias, *, tile_m=1024, compute_dtype=jnp.bfloat16):
    """Convenience wrapper: y = tanh(x @ weight.T + bias).

    weight: (outputDim, inputDim) torch layout.  For repeated calls, hoist
    prepare_linear_hash_params() out of the step function.
    """
    w_padded, bias2d = prepare_linear_hash_params(
        weight, bias, compute_dtype=compute_dtype)
    return linear_hash_prepared(x, w_padded, bias2d, tile_m=tile_m,
                                compute_dtype=compute_dtype)


if __name__ == "__main__":
    inputDim, outputDim = 512, 32
    batch = 8

    key = jax.random.PRNGKey(0)
    kx, kw, kb = jax.random.split(key, 3)

    # Deterministic synthetic parameters (Kaiming-uniform-ish like nn.Linear).
    bound = 1.0 / (inputDim ** 0.5)
    weight = jax.random.uniform(kw, (outputDim, inputDim), jnp.float32, -bound, bound)
    bias = jax.random.uniform(kb, (outputDim,), jnp.float32, -bound, bound)
    x = jax.random.normal(kx, (batch, inputDim), jnp.float32)

    # One-time parameter prep, then the Pallas forward pass.
    w_padded, bias2d = prepare_linear_hash_params(weight, bias)
    y = linear_hash_prepared(x, w_padded, bias2d)
    jax.block_until_ready(y)

    # Reference in plain f32 JAX (same math as torch: x @ W.T + b, then tanh).
    y_ref = jnp.tanh(x @ weight.T + bias)
    assert y.shape == (batch, outputDim)
    # bf16 matmul path: allow ~1e-2 deviation from the f32 reference.
    assert jnp.allclose(y, y_ref, atol=2e-2), "mismatch vs reference"

    print("KERNEL_OK")
</pallas_src>

<mosaic_0001>
module attributes {stable_mosaic.version = 11 : i64} {
  func.func @_linear_hash_kernel(%arg0: i32, %arg1: memref<8x512xf32, #tpu.memory_space<vmem>>, %arg2: memref<512x128xbf16, #tpu.memory_space<vmem>>, %arg3: memref<1x32xf32, #tpu.memory_space<vmem>>, %arg4: memref<8x32xf32, #tpu.memory_space<vmem>>) attributes {dimension_semantics = [#tpu.dimension_semantics<parallel>], iteration_bounds = array<i64: 1>, scalar_prefetch = 0 : i64, scratch_operands = 0 : i64, tpu.core_type = #tpu.core_type<tc>, window_params = [{transform_indices = @transform_0, window_bounds = array<i64: 8, 512>}, {pipeline_mode = #tpu.pipeline_mode<synchronous>, transform_indices = @transform_1, window_bounds = array<i64: 512, 128>}, {pipeline_mode = #tpu.pipeline_mode<synchronous>, transform_indices = @transform_2, window_bounds = array<i64: 1, 32>}, {transform_indices = @transform_3, window_bounds = array<i64: 8, 32>}]} {
    %c0 = arith.constant 0 : index
    %c0_0 = arith.constant 0 : index
    %0 = vector.load %arg1[%c0, %c0_0] : memref<8x512xf32, #tpu.memory_space<vmem>>, vector<8x512xf32>
    %1 = arith.truncf %0 : vector<8x512xf32> to vector<8x512xbf16>
    %c0_1 = arith.constant 0 : index
    %c0_2 = arith.constant 0 : index
    %2 = vector.load %arg2[%c0_1, %c0_2] : memref<512x128xbf16, #tpu.memory_space<vmem>>, vector<512x128xbf16>
    %cst = arith.constant dense<0.000000e+00> : vector<8x128xf32>
    %3 = tpu.matmul %1, %2, %cst {dimension_numbers = #tpu.dot_dimension_numbers<[1], [0], [0], [1], [0, 0, 1, 1], [], []>} : vector<8x512xbf16>, vector<512x128xbf16>, vector<8x128xf32> -> vector<8x128xf32>
    %4 = vector.extract_strided_slice %3 {offsets = [0, 0], sizes = [8, 32], strides = [1, 1]} : vector<8x128xf32> to vector<8x32xf32>
    %c0_3 = arith.constant 0 : index
    %c0_4 = arith.constant 0 : index
    %5 = vector.load %arg3[%c0_3, %c0_4] : memref<1x32xf32, #tpu.memory_space<vmem>>, vector<1x32xf32>
    %6 = vector.broadcast %5 : vector<1x32xf32> to vector<8x32xf32>
    %7 = arith.addf %4, %6 : vector<8x32xf32>
    %8 = math.tanh %7 : vector<8x32xf32>
    %c0_5 = arith.constant 0 : index
    %c0_6 = arith.constant 0 : index
    %9 = vector.load %arg4[%c0_5, %c0_6] : memref<8x32xf32, #tpu.memory_space<vmem>>, vector<8x32xf32>
    tpu.vector_store %arg4[%c0_5, %c0_6], %8 {strides = array<i32>} : memref<8x32xf32, #tpu.memory_space<vmem>>, vector<8x32xf32>,
    return
  }
  func.func @transform_0(%arg0: i32) -> (i32, i32) {
    %c0_i32 = arith.constant 0 : i32
    %c0_i32_0 = arith.constant 0 : i32
    return %arg0, %c0_i32 : i32, i32
  }
  func.func @transform_1(%arg0: i32) -> (i32, i32) {
    %c0_i32 = arith.constant 0 : i32
    %c0_i32_0 = arith.constant 0 : i32
    %c0_i32_1 = arith.constant 0 : i32
    return %c0_i32, %c0_i32_0 : i32, i32
  }
  func.func @transform_2(%arg0: i32) -> (i32, i32) {
    %c0_i32 = arith.constant 0 : i32
    %c0_i32_0 = arith.constant 0 : i32
    %c0_i32_1 = arith.constant 0 : i32
    return %c0_i32, %c0_i32_0 : i32, i32
  }
  func.func @transform_3(%arg0: i32) -> (i32, i32) {
    %c0_i32 = arith.constant 0 : i32
    %c0_i32_0 = arith.constant 0 : i32
    return %arg0, %c0_i32 : i32, i32
  }
}

</mosaic_0001>

<llo_original>
// kernel: tpu_custom_call.1
$region0: #{tpu_custom_call.1}
  #allocation0 [shape = 'u32[]', space=smem, size = 0x4, offset = 0x4, fixed_abs, tag = 'smem constant byte address 0x4 - core index']
  #allocation1 [shape = 'u32[72,128]{1,0:T(1,128)}', space=vmem, size = 0x9000, scoped, tag = 'internal scratch']
  %s0 = inlined_call_operand.hbm [shape: f32[8,512], index: 0, kind: input, shape index: {}]
  %s1 = inlined_call_operand.hbm [shape: bf16[512,128], index: 1, kind: input, shape index: {}]
  %s2 = inlined_call_operand.vmem [shape: f32[1,32], index: 2, kind: input, shape index: {}]
  %s3 = inlined_call_operand.hbm [shape: f32[8,32], index: 3, kind: output, shape index: {}]
  %s4 = sld [smem:[#allocation0]]
  $region30: #{tpu_custom_call.1} parent=0
    _
  %s6 = ssub.s32 1, %s4
  %s7 = scalar_select 0, %s6, %s4
  $region1: #{tpu_custom_call.1} parent=0
    #allocation2 [shape = 'u8[16384]{0}', space=vmem, size = 0x4000, scoped, tag = 'input window, operand 0, single buffered']
    #allocation3 [shape = 's32[1]{0}', space=sflag, size = 0x4, scoped, tag = 'scoped memory for tpu_custom_call.1']
    #allocation4 [shape = 's32[1]{0}', space=sflag, size = 0x4, scoped, tag = 'scoped memory for tpu_custom_call.1']
    #allocation5 [shape = 'u8[131072]{0}', space=vmem, size = 0x20000, scoped, tag = 'input window, operand 1, single buffered']
    #allocation6 [shape = 's32[1]{0}', space=sflag, size = 0x4, scoped, tag = 'scoped memory for tpu_custom_call.1']
    #allocation7 [shape = 'u8[4096]{0}', space=vmem, size = 0x1000, scoped, tag = 'output window, operand 0, single buffered']
    %8 = vsyncpa [#allocation3], 0
    %9 = vsyncpa [#allocation6], 0
    %10 = vsyncpa [#allocation4], 0
    // Predicated region
    $region2: #{tpu_custom_call.1} parent=1 // pred_check
      _
    $region3: #{tpu_custom_call.1} parent=1 // pred_check_branch
      %12 = sbr.rel (0) target = $region5
    $region4: #{tpu_custom_call.1} parent=1 // pred_region
      %14 = vsyncadd [#allocation3], 0
      %s16 = sshll.u32 %s0, 4
      %s17 = int_to_ptr.hbm [resolvable:$true] %s16
      %s18 = sshll.u32 [#allocation2], 4
      %s19 = int_to_ptr.vmem [resolvable:$true] %s18
      %21 = dma.hbm_to_vmem [thread:$0]  %s17, 512, %s19, [#allocation3]
    $region5: #{tpu_custom_call.1} parent=1 // pred_fallthru
      _
    // Predicated region
    $region6: #{tpu_custom_call.1} parent=1 // pred_check
      _
    $region7: #{tpu_custom_call.1} parent=1 // pred_check_branch
      %23 = sbr.rel (0) target = $region9
    $region8: #{tpu_custom_call.1} parent=1 // pred_region
      %25 = vsyncadd [#allocation6], 0
      %s26 = sshll.u32 %s1, 4
      %s27 = int_to_ptr.hbm [resolvable:$true] %s26
      %s28 = sshll.u32 [#allocation5], 4
      %s29 = int_to_ptr.vmem [resolvable:$true] %s28
      %34 = dma.hbm_to_vmem [thread:$0]  %s27, 4096, %s29, [#allocation6], 64, 64, 4
    $region9: #{tpu_custom_call.1} parent=1 // pred_fallthru
      _
    // Predicated region
    $region10: #{tpu_custom_call.1} parent=1 // pred_check
      _
    $region11: #{tpu_custom_call.1} parent=1 // pred_check_branch
      %36 = sbr.rel (0) target = $region13
    $region12: #{tpu_custom_call.1} parent=1 // pred_region
      _
    $region13: #{tpu_custom_call.1} parent=1 // pred_fallthru
      _
    // Predicated region
    $region14: #{tpu_custom_call.1} parent=1 // pred_check
      _
    $region15: #{tpu_custom_call.1} parent=1 // pred_check_branch
      %38 = sbr.rel (0) target = $region17
    $region16: #{tpu_custom_call.1} parent=1 // pred_region
      %40 = dma.done [#allocation3], 512
    $region17: #{tpu_custom_call.1} parent=1 // pred_fallthru
      _
    // Predicated region
    $region18: #{tpu_custom_call.1} parent=1 // pred_check
      _
    $region19: #{tpu_custom_call.1} parent=1 // pred_check_branch
      %42 = sbr.rel (0) target = $region21
    $region20: #{tpu_custom_call.1} parent=1 // pred_region
      %44 = dma.done [#allocation6], 4096
    $region21: #{tpu_custom_call.1} parent=1 // pred_fallthru
      _
    %v45 = vld [vmem:[#allocation2] sm:$0xff]
    %v46 = vld [vmem:[#allocation2 + $0x8] sm:$0xff]
    %v47 = vld [vmem:[#allocation2 + $0x10] sm:$0xff]
    %v48 = vld [vmem:[#allocation2 + $0x18] sm:$0xff]
    %v49 = vpack.c.bf16 %v45, %v45
    %v50 = vpack.c.bf16 %v46, %v46
    %v51 = vpack.c.bf16 %v47, %v47
    %v52 = vpack.c.bf16 %v48, %v48
    %v53 = vld [vmem:[#allocation5] sm:$0xf]
    %v54 = vld [vmem:[#allocation5 + $0x4] sm:$0xf]
    %v55 = vld [vmem:[#allocation5 + $0x8] sm:$0xf]
    %v56 = vld [vmem:[#allocation5 + $0xc] sm:$0xf]
    %v57 = vld [vmem:[#allocation5 + $0x10] sm:$0xf]
    %v58 = vld [vmem:[#allocation5 + $0x14] sm:$0xf]
    %v59 = vld [vmem:[#allocation5 + $0x18] sm:$0xf]
    %v60 = vld [vmem:[#allocation5 + $0x1c] sm:$0xf]
    %v61 = vld [vmem:[#allocation5 + $0x20] sm:$0xf]
    %v62 = vld [vmem:[#allocation5 + $0x24] sm:$0xf]
    %v63 = vld [vmem:[#allocation5 + $0x28] sm:$0xf]
    %v64 = vld [vmem:[#allocation5 + $0x2c] sm:$0xf]
    %v65 = vld [vmem:[#allocation5 + $0x30] sm:$0xf]
    %v66 = vld [vmem:[#allocation5 + $0x34] sm:$0xf]
    %v67 = vld [vmem:[#allocation5 + $0x38] sm:$0xf]
    %v68 = vld [vmem:[#allocation5 + $0x3c] sm:$0xf]
    %v69 = vld [vmem:[#allocation5 + $0x40] sm:$0xf]
    %v70 = vld [vmem:[#allocation5 + $0x44] sm:$0xf]
    %v71 = vld [vmem:[#allocation5 + $0x48] sm:$0xf]
    %v72 = vld [vmem:[#allocation5 + $0x4c] sm:$0xf]
    %v73 = vld [vmem:[#allocation5 + $0x50] sm:$0xf]
    %v74 = vld [vmem:[#allocation5 + $0x54] sm:$0xf]
    %v75 = vld [vmem:[#allocation5 + $0x58] sm:$0xf]
    %v76 = vld [vmem:[#allocation5 + $0x5c] sm:$0xf]
    %v77 = vld [vmem:[#allocation5 + $0x60] sm:$0xf]
    %v78 = vld [vmem:[#allocation5 + $0x64] sm:$0xf]
    %v79 = vld [vmem:[#allocation5 + $0x68] sm:$0xf]
    %v80 = vld [vmem:[#allocation5 + $0x6c] sm:$0xf]
    %v81 = vld [vmem:[#allocation5 + $0x70] sm:$0xf]
    %v82 = vld [vmem:[#allocation5 + $0x74] sm:$0xf]
    %v83 = vld [vmem:[#allocation5 + $0x78] sm:$0xf]
    %v84 = vld [vmem:[#allocation5 + $0x7c] sm:$0xf]
    %v85 = vld [vmem:[#allocation5 + $0x80] sm:$0xf]
    %v86 = vld [vmem:[#allocation5 + $0x84] sm:$0xf]
    %v87 = vld [vmem:[#allocation5 + $0x88] sm:$0xf]
    %v88 = vld [vmem:[#allocation5 + $0x8c] sm:$0xf]
    %v89 = vld [vmem:[#allocation5 + $0x90] sm:$0xf]
    %v90 = vld [vmem:[#allocation5 + $0x94] sm:$0xf]
    %v91 = vld [vmem:[#allocation5 + $0x98] sm:$0xf]
    %v92 = vld [vmem:[#allocation5 + $0x9c] sm:$0xf]
    %v93 = vld [vmem:[#allocation5 + $0xa0] sm:$0xf]
    %v94 = vld [vmem:[#allocation5 + $0xa4] sm:$0xf]
    %v95 = vld [vmem:[#allocation5 + $0xa8] sm:$0xf]
    %v96 = vld [vmem:[#allocation5 + $0xac] sm:$0xf]
    %v97 = vld [vmem:[#allocation5 + $0xb0] sm:$0xf]
    %v98 = vld [vmem:[#allocation5 + $0xb4] sm:$0xf]
    %v99 = vld [vmem:[#allocation5 + $0xb8] sm:$0xf]
    %v100 = vld [vmem:[#allocation5 + $0xbc] sm:$0xf]
    %v101 = vld [vmem:[#allocation5 + $0xc0] sm:$0xf]
    %v102 = vld [vmem:[#allocation5 + $0xc4] sm:$0xf]
    %v103 = vld [vmem:[#allocation5 + $0xc8] sm:$0xf]
    %v104 = vld [vmem:[#allocation5 + $0xcc] sm:$0xf]
    %v105 = vld [vmem:[#allocation5 + $0xd0] sm:$0xf]
    %v106 = vld [vmem:[#allocation5 + $0xd4] sm:$0xf]
    %v107 = vld [vmem:[#allocation5 + $0xd8] sm:$0xf]
    %v108 = vld [vmem:[#allocation5 + $0xdc] sm:$0xf]
    %v109 = vld [vmem:[#allocation5 + $0xe0] sm:$0xf]
    %v110 = vld [vmem:[#allocation5 + $0xe4] sm:$0xf]
    %v111 = vld [vmem:[#allocation5 + $0xe8] sm:$0xf]
    %v112 = vld [vmem:[#allocation5 + $0xec] sm:$0xf]
    %v113 = vld [vmem:[#allocation5 + $0xf0] sm:$0xf]
    %v114 = vld [vmem:[#allocation5 + $0xf4] sm:$0xf]
    %v115 = vld [vmem:[#allocation5 + $0xf8] sm:$0xf]
    %v116 = vld [vmem:[#allocation5 + $0xfc] sm:$0xf]
    %v181 = vunpack.c.l.b16 %v53
    %v182 = vunpack.c.l.b16 %v54
    %v183 = vunpack.c.l.b16 %v55
    %v184 = vunpack.c.l.b16 %v56
    %v185 = vunpack.c.l.b16 %v57
    %v186 = vunpack.c.l.b16 %v58
    %v187 = vunpack.c.l.b16 %v59
    %v188 = vunpack.c.l.b16 %v60
    %v189 = vunpack.c.l.b16 %v61
    %v190 = vunpack.c.l.b16 %v62
    %v191 = vunpack.c.l.b16 %v63
    %v192 = vunpack.c.l.b16 %v64
    %v193 = vunpack.c.l.b16 %v65
    %v194 = vunpack.c.l.b16 %v66
    %v195 = vunpack.c.l.b16 %v67
    %v196 = vunpack.c.l.b16 %v68
    %v197 = vunpack.c.l.b16 %v69
    %v198 = vunpack.c.l.b16 %v70
    %v199 = vunpack.c.l.b16 %v71
    %v200 = vunpack.c.l.b16 %v72
    %v201 = vunpack.c.l.b16 %v73
    %v202 = vunpack.c.l.b16 %v74
    %v203 = vunpack.c.l.b16 %v75
    %v204 = vunpack.c.l.b16 %v76
    %v205 = vunpack.c.l.b16 %v77
    %v206 = vunpack.c.l.b16 %v78
    %v207 = vunpack.c.l.b16 %v79
    %v208 = vunpack.c.l.b16 %v80
    %v209 = vunpack.c.l.b16 %v81
    %v210 = vunpack.c.l.b16 %v82
    %v211 = vunpack.c.l.b16 %v83
    %v212 = vunpack.c.l.b16 %v84
    %v213 = vunpack.c.l.b16 %v85
    %v214 = vunpack.c.l.b16 %v86
    %v215 = vunpack.c.l.b16 %v87
    %v216 = vunpack.c.l.b16 %v88
    %v217 = vunpack.c.l.b16 %v89
    %v218 = vunpack.c.l.b16 %v90
    %v219 = vunpack.c.l.b16 %v91
    %v220 = vunpack.c.l.b16 %v92
    %v221 = vunpack.c.l.b16 %v93
    %v222 = vunpack.c.l.b16 %v94
    %v223 = vunpack.c.l.b16 %v95
    %v224 = vunpack.c.l.b16 %v96
    %v225 = vunpack.c.l.b16 %v97
    %v226 = vunpack.c.l.b16 %v98
    %v227 = vunpack.c.l.b16 %v99
    %v228 = vunpack.c.l.b16 %v100
    %v229 = vunpack.c.l.b16 %v101
    %v230 = vunpack.c.l.b16 %v102
    %v231 = vunpack.c.l.b16 %v103
    %v232 = vunpack.c.l.b16 %v104
    %v233 = vunpack.c.l.b16 %v105
    %v234 = vunpack.c.l.b16 %v106
    %v235 = vunpack.c.l.b16 %v107
    %v236 = vunpack.c.l.b16 %v108
    %v237 = vunpack.c.l.b16 %v109
    %v238 = vunpack.c.l.b16 %v110
    %v239 = vunpack.c.l.b16 %v111
    %v240 = vunpack.c.l.b16 %v112
    %v241 = vunpack.c.l.b16 %v113
    %v242 = vunpack.c.l.b16 %v114
    %v243 = vunpack.c.l.b16 %v115
    %v244 = vunpack.c.l.b16 %v116
    %v245 = vpack.c.b16 %v182, %v181
    %v246 = vpack.c.b16 %v184, %v183
    %v247 = vpack.c.b16 %v186, %v185
    %v248 = vpack.c.b16 %v188, %v187
    %v249 = vpack.c.b16 %v190, %v189
    %v250 = vpack.c.b16 %v192, %v191
    %v251 = vpack.c.b16 %v194, %v193
    %v252 = vpack.c.b16 %v196, %v195
    %v253 = vpack.c.b16 %v198, %v197
    %v254 = vpack.c.b16 %v200, %v199
    %v255 = vpack.c.b16 %v202, %v201
    %v256 = vpack.c.b16 %v204, %v203
    %v257 = vpack.c.b16 %v206, %v205
    %v258 = vpack.c.b16 %v208, %v207
    %v259 = vpack.c.b16 %v210, %v209
    %v260 = vpack.c.b16 %v212, %v211
    %v261 = vpack.c.b16 %v214, %v213
    %v262 = vpack.c.b16 %v216, %v215
    %v263 = vpack.c.b16 %v218, %v217
    %v264 = vpack.c.b16 %v220, %v219
    %v265 = vpack.c.b16 %v222, %v221
    %v266 = vpack.c.b16 %v224, %v223
    %v267 = vpack.c.b16 %v226, %v225
    %v268 = vpack.c.b16 %v228, %v227
    %v269 = vpack.c.b16 %v230, %v229
    %v270 = vpack.c.b16 %v232, %v231
    %v271 = vpack.c.b16 %v234, %v233
    %v272 = vpack.c.b16 %v236, %v235
    %v273 = vpack.c.b16 %v238, %v237
    %v274 = vpack.c.b16 %v240, %v239
    %v275 = vpack.c.b16 %v242, %v241
    %v276 = vpack.c.b16 %v244, %v243
    %309 = vmatpush.bf16.msra.mxu0 %v252
    %310 = vmatpush.bf16.msra.mxu0 %v251
    %311 = vmatpush.bf16.msra.mxu0 %v250
    %312 = vmatpush.bf16.msra.mxu0 %v249
    %313 = vmatpush.bf16.msra.mxu0 %v248
    %314 = vmatpush.bf16.msra.mxu0 %v247
    %315 = vmatpush.bf16.msra.mxu0 %v246
    %316 = vmatpush.bf16.msra.mxu0 %v245
    %317 = vmatmul.bf16.gmra.mxu0 %v49
    %v318 = vpop.f32.mrf.mxu0
    %v319 = vadd.f32 0.0, %v318
    %v320 = vpop.f32.mrf.mxu0
    %321 = vdwg.mxu0
    %322 = vmatpush.bf16.msra.mxu0 %v260
    %323 = vmatpush.bf16.msra.mxu0 %v259
    %324 = vmatpush.bf16.msra.mxu0 %v258
    %325 = vmatpush.bf16.msra.mxu0 %v257
    %326 = vmatpush.bf16.msra.mxu0 %v256
    %327 = vmatpush.bf16.msra.mxu0 %v255
    %328 = vmatpush.bf16.msra.mxu0 %v254
    %329 = vmatpush.bf16.msra.mxu0 %v253
    %330 = vmatmul.bf16.gmra.mxu0 %v50
    %v331 = vpop.f32.mrf.mxu0
    %v332 = vadd.f32 %v319, %v331
    %v333 = vpop.f32.mrf.mxu0
    %334 = vdwg.mxu0
    %335 = vmatpush.bf16.msra.mxu0 %v268
    %336 = vmatpush.bf16.msra.mxu0 %v267
    %337 = vmatpush.bf16.msra.mxu0 %v266
    %338 = vmatpush.bf16.msra.mxu0 %v265
    %339 = vmatpush.bf16.msra.mxu0 %v264
    %340 = vmatpush.bf16.msra.mxu0 %v263
    %341 = vmatpush.bf16.msra.mxu0 %v262
    %342 = vmatpush.bf16.msra.mxu0 %v261
    %343 = vmatmul.bf16.gmra.mxu0 %v51
    %v344 = vpop.f32.mrf.mxu0
    %v345 = vadd.f32 %v332, %v344
    %v346 = vpop.f32.mrf.mxu0
    %347 = vdwg.mxu0
    %348 = vmatpush.bf16.msra.mxu0 %v276
    %349 = vmatpush.bf16.msra.mxu0 %v275
    %350 = vmatpush.bf16.msra.mxu0 %v274
    %351 = vmatpush.bf16.msra.mxu0 %v273
    %352 = vmatpush.bf16.msra.mxu0 %v272
    %353 = vmatpush.bf16.msra.mxu0 %v271
    %354 = vmatpush.bf16.msra.mxu0 %v270
    %355 = vmatpush.bf16.msra.mxu0 %v269
    %356 = vmatmul.bf16.gmra.mxu0 %v52
    %v357 = vpop.f32.mrf.mxu0
    %v358 = vadd.f32 %v345, %v357
    %v359 = vpop.f32.mrf.mxu0
    %360 = vdwg.mxu0
    %v361 = vld [vmem:[%s2] sm:$0x1]
    %v363 = vperm.slane %v361, 0
    %v365 = vadd.f32 %v358, %v363
    %v366 = vtanh.pop %v365
    %vm367 = vcmask 261120
    %368 = vst.msk [vmem:[#allocation7] sm:$0xff] %vm367, %v366
    // Predicated region
    $region22: #{tpu_custom_call.1} parent=1 // pred_check
      _
    $region23: #{tpu_custom_call.1} parent=1 // pred_check_branch
      %370 = sbr.rel (0) target = $region25
    $region24: #{tpu_custom_call.1} parent=1 // pred_region
      %372 = vsyncadd [#allocation4], 0
      %s374 = sshll.u32 [#allocation7], 4
      %s375 = int_to_ptr.vmem [resolvable:$true] %s374
      %s376 = sshll.u32 %s3, 4
      %s377 = int_to_ptr.hbm [resolvable:$true] %s376
      %379 = dma.vmem_to_hbm [thread:$0]  %s375, 128, %s377, [#allocation4]
    $region25: #{tpu_custom_call.1} parent=1 // pred_fallthru
      _
    // Predicated region
    $region26: #{tpu_custom_call.1} parent=1 // pred_check
      _
    $region27: #{tpu_custom_call.1} parent=1 // pred_check_branch
      %381 = sbr.rel (0) target = $region29
    $region28: #{tpu_custom_call.1} parent=1 // pred_region
      %383 = dma.done [#allocation4], 128
    $region29: #{tpu_custom_call.1} parent=1 // pred_fallthru
      _
    %384 = vsyncpa [#allocation3], 1
    %385 = vsyncpa [#allocation6], 1
    %386 = vsyncpa [#allocation4], 1

</llo_original>
